<compile_context>
chip_gen: v6e
topology: v6e:2x2x1
jax: 0.10.0
libtpu: 0.0.40
codegen_flags: <defaults>
</compile_context>

<pallas_src>
import jax
import jax.numpy as jnp
from jax.experimental import pallas as pl
from jax.experimental.pallas import tpu as pltpu


def _round_up(x, m):
    return (x + m - 1) // m * m


def _vmem_budget_bytes():
    """~75% of per-core VMEM: ~48 MiB on v7x, ~96 MiB on v5e/v6e."""
    try:
        cap = int(pltpu.get_tpu_info().vmem_capacity_bytes)
    except Exception:
        cap = 64 << 20  # conservative: assume v7x-sized VMEM
    return max(32 << 20, (cap * 3) // 4)


# --------------------------------------------------------------------------
# Path 1: HBM row-gather via per-token async DMA (large vocab).
# --------------------------------------------------------------------------
def _dma_gather_kernel(ids_smem, table_hbm, o_ref, sem):
    # ids_smem  : (N_pad,) int32 in SMEM (scalar-prefetched)
    # table_hbm : (V, D)   embedding table, left in HBM (pl.ANY)
    # o_ref     : (T, D)   output tile in VMEM
    # sem       : single DMA semaphore (all copies are the same size)
    t = pl.program_id(0)
    tile = o_ref.shape[0]

    def issue(i, carry):
        row = ids_smem[t * tile + i]
        pltpu.make_async_copy(
            table_hbm.at[pl.ds(row, 1), :],
            o_ref.at[pl.ds(i, 1), :],
            sem,
        ).start()
        return carry

    jax.lax.fori_loop(0, tile, issue, 0)

    def wait(i, carry):
        # Dummy src slice: only dst/size matter for the wait.
        pltpu.make_async_copy(
            table_hbm.at[pl.ds(0, 1), :],
            o_ref.at[pl.ds(i, 1), :],
            sem,
        ).wait()
        return carry

    jax.lax.fori_loop(0, tile, wait, 0)


# --------------------------------------------------------------------------
# Path 2: resident table + one-hot MXU matmul (small/medium vocab).
# --------------------------------------------------------------------------
def _resident_gather_kernel(ids_ref, table_ref, o_ref):
    # ids_ref   : (T, 1)  int32
    # table_ref : (V, D)  full table (constant block index -> fetched once)
    # o_ref     : (T, D)
    tile = o_ref.shape[0]
    vocab = table_ref.shape[0]
    cols = jax.lax.broadcasted_iota(jnp.int32, (tile, vocab), 1)
    one_hot = (ids_ref[...] == cols).astype(table_ref.dtype)
    # Exactly one 1.0 per row -> the matmul is an exact row select.
    o_ref[...] = jnp.dot(
        one_hot, table_ref[...], preferred_element_type=jnp.float32
    ).astype(o_ref.dtype)


def trainable_embedding(x_ids, emb_table, *, block_tokens=128, path="auto"):
    """Pallas TPU forward of TrainableEmbedding: out[..., :] = emb_table[x_ids[...], :].

    x_ids     : int   [...]   (e.g. [B, S]) token ids
    emb_table : float [V, D]  embedding weight (nn.Embedding.weight)
    path      : "auto" | "resident" | "dma"
    returns   : float [..., D]
    """
    V, D = emb_table.shape
    lead_shape = x_ids.shape
    ids = x_ids.reshape(-1).astype(jnp.int32)
    N = int(ids.shape[0])

    # Bounds safety: PyTorch would raise on out-of-range ids; we clamp instead.
    ids = jnp.clip(ids, 0, V - 1)

    T = max(8, min(_round_up(block_tokens, 8), _round_up(N, 8)))
    N_pad = _round_up(N, T)
    ids_pad = jnp.pad(ids, (0, N_pad - N))  # pad tokens gather row 0, sliced off
    num_tiles = N_pad // T

    itemsize = jnp.dtype(emb_table.dtype).itemsize
    budget = int(_vmem_budget_bytes())

    # VMEM the resident path would need (double-buffered table + output blocks,
    # physical (8,128) padding, one-hot staging).
    Vp, Dp = _round_up(V, 8), _round_up(D, 128)
    resident_bytes = (
        2 * Vp * Dp * itemsize        # table block (double-buffered)
        + 2 * T * Dp * itemsize       # output block (double-buffered)
        + 2 * T * 128 * 4             # ids block (lane-padded)
        + T * _round_up(V, 128) * 4   # one-hot staging
    )
    if path == "auto":
        path = "resident" if resident_bytes <= (budget * 3) // 5 else "dma"

    if path == "resident":
        grid_spec = pltpu.PrefetchScalarGridSpec(
            num_scalar_prefetch=0,
            grid=(num_tiles,),
            in_specs=[
                pl.BlockSpec((T, 1), lambda t: (t, 0)),
                # Constant block index -> table DMA'd from HBM once per call.
                pl.BlockSpec((V, D), lambda t: (0, 0)),
            ],
            out_specs=pl.BlockSpec((T, D), lambda t: (t, 0)),
        )
        out = pl.pallas_call(
            _resident_gather_kernel,
            out_shape=jax.ShapeDtypeStruct((N_pad, D), emb_table.dtype),
            grid_spec=grid_spec,
            compiler_params=pltpu.CompilerParams(
                dimension_semantics=("parallel",),
                vmem_limit_bytes=budget,
            ),
        )(ids_pad.reshape(N_pad, 1), emb_table)
    else:
        grid_spec = pltpu.PrefetchScalarGridSpec(
            num_scalar_prefetch=1,                          # ids -> SMEM
            grid=(num_tiles,),
            in_specs=[pl.BlockSpec(memory_space=pl.ANY)],   # table stays in HBM
            out_specs=pl.BlockSpec((T, D), lambda t, ids: (t, 0)),
            scratch_shapes=[pltpu.SemaphoreType.DMA],
        )
        out = pl.pallas_call(
            _dma_gather_kernel,
            out_shape=jax.ShapeDtypeStruct((N_pad, D), emb_table.dtype),
            grid_spec=grid_spec,
            compiler_params=pltpu.CompilerParams(
                dimension_semantics=("parallel",),
                vmem_limit_bytes=budget,
            ),
        )(ids_pad, emb_table)

    return out[:N].reshape(*lead_shape, D)


def _reference(x_ids, emb_table):
    return jnp.take(emb_table, x_ids, axis=0)


if __name__ == "__main__":
    key = jax.random.PRNGKey(0)

    # ---- Test 1: small vocab / d_model -> resident-table (one-hot MXU) path ----
    B, S, VOCAB, DM = 2, 8, 100, 64
    k_ids, k_emb, key = jax.random.split(key, 3)
    x = jax.random.randint(k_ids, (B, S), 0, VOCAB, dtype=jnp.int32)
    emb = jax.random.normal(k_emb, (VOCAB, DM), dtype=jnp.float32)
    emb = emb.at[0].set(0.0)  # nn.Embedding(padding_idx=0) zeroes row 0 at init
    out = jax.block_until_ready(trainable_embedding(x, emb))
    assert out.shape == (B, S, DM)
    assert jnp.allclose(out, _reference(x, emb), rtol=1e-6, atol=1e-6)

    # ---- Test 2: multiple token tiles, resident path ----
    B2, S2, VOCAB2, DM2 = 4, 96, 1000, 128
    k_ids2, k_emb2, key = jax.random.split(key, 3)
    x2 = jax.random.randint(k_ids2, (B2, S2), 0, VOCAB2, dtype=jnp.int32)
    emb2 = jax.random.normal(k_emb2, (VOCAB2, DM2), dtype=jnp.float32)
    emb2 = emb2.at[0].set(0.0)
    out2 = jax.block_until_ready(trainable_embedding(x2, emb2))
    assert out2.shape == (B2, S2, DM2)
    assert jnp.allclose(out2, _reference(x2, emb2), rtol=1e-6, atol=1e-6)

    # ---- Test 3: force the HBM row-gather DMA path (large-vocab path) ----
    B3, S3, VOCAB3, DM3 = 2, 64, 1000, 128
    k_ids3, k_emb3, key = jax.random.split(key, 3)
    x3 = jax.random.randint(k_ids3, (B3, S3), 0, VOCAB3, dtype=jnp.int32)
    emb3 = jax.random.normal(k_emb3, (VOCAB3, DM3), dtype=jnp.float32)
    emb3 = emb3.at[0].set(0.0)
    out3 = jax.block_until_ready(trainable_embedding(x3, emb3, path="dma"))
    assert out3.shape == (B3, S3, DM3)
    assert jnp.allclose(out3, _reference(x3, emb3), rtol=1e-6, atol=1e-6)

    # ---- Test 4: DMA path with unaligned V/D and a ragged token count ----
    B4, S4, VOCAB4, DM4 = 2, 50, 300, 96
    k_ids4, k_emb4, key = jax.random.split(key, 3)
    x4 = jax.random.randint(k_ids4, (B4, S4), 0, VOCAB4, dtype=jnp.int32)
    emb4 = jax.random.normal(k_emb4, (VOCAB4, DM4), dtype=jnp.float32)
    emb4 = emb4.at[0].set(0.0)
    out4 = jax.block_until_ready(trainable_embedding(x4, emb4, path="dma"))
    assert out4.shape == (B4, S4, DM4)
    assert jnp.allclose(out4, _reference(x4, emb4), rtol=1e-6, atol=1e-6)

    print("KERNEL_OK")
</pallas_src>

<mosaic_0001>
module attributes {stable_mosaic.version = 11 : i64} {
  func.func @_resident_gather_kernel(%arg0: i32, %arg1: memref<16x1xi32, #tpu.memory_space<vmem>>, %arg2: memref<100x64xf32, #tpu.memory_space<vmem>>, %arg3: memref<16x64xf32, #tpu.memory_space<vmem>>) attributes {dimension_semantics = [#tpu.dimension_semantics<parallel>], iteration_bounds = array<i64: 1>, scalar_prefetch = 0 : i64, scratch_operands = 0 : i64, tpu.core_type = #tpu.core_type<tc>, window_params = [{transform_indices = @transform_0, window_bounds = array<i64: 16, 1>}, {pipeline_mode = #tpu.pipeline_mode<synchronous>, transform_indices = @transform_1, window_bounds = array<i64: 100, 64>}, {transform_indices = @transform_2, window_bounds = array<i64: 16, 64>}]} {
    %0 = tpu.iota {dimensions = array<i32: 1>} : vector<16x100xi32>
    %c0 = arith.constant 0 : index
    %c0_0 = arith.constant 0 : index
    %1 = vector.load %arg1[%c0, %c0_0] : memref<16x1xi32, #tpu.memory_space<vmem>>, vector<16x1xi32>
    %2 = vector.broadcast %1 : vector<16x1xi32> to vector<16x100xi32>
    %3 = arith.cmpi eq, %2, %0 : vector<16x100xi32>
    %4 = arith.extui %3 : vector<16x100xi1> to vector<16x100xi32>
    %5 = arith.sitofp %4 : vector<16x100xi32> to vector<16x100xf32>
    %c0_1 = arith.constant 0 : index
    %c0_2 = arith.constant 0 : index
    %6 = vector.load %arg2[%c0_1, %c0_2] : memref<100x64xf32, #tpu.memory_space<vmem>>, vector<100x64xf32>
    %cst = arith.constant dense<0.000000e+00> : vector<16x64xf32>
    %7 = tpu.matmul %5, %6, %cst {dimension_numbers = #tpu.dot_dimension_numbers<[1], [0], [0], [1], [0, 0, 1, 1], [], []>} : vector<16x100xf32>, vector<100x64xf32>, vector<16x64xf32> -> vector<16x64xf32>
    %c0_3 = arith.constant 0 : index
    %c0_4 = arith.constant 0 : index
    %8 = vector.load %arg3[%c0_3, %c0_4] : memref<16x64xf32, #tpu.memory_space<vmem>>, vector<16x64xf32>
    tpu.vector_store %arg3[%c0_3, %c0_4], %7 {strides = array<i32>} : memref<16x64xf32, #tpu.memory_space<vmem>>, vector<16x64xf32>,
    return
  }
  func.func @transform_0(%arg0: i32) -> (i32, i32) {
    %c0_i32 = arith.constant 0 : i32
    %c0_i32_0 = arith.constant 0 : i32
    return %arg0, %c0_i32 : i32, i32
  }
  func.func @transform_1(%arg0: i32) -> (i32, i32) {
    %c0_i32 = arith.constant 0 : i32
    %c0_i32_0 = arith.constant 0 : i32
    %c0_i32_1 = arith.constant 0 : i32
    return %c0_i32, %c0_i32_0 : i32, i32
  }
  func.func @transform_2(%arg0: i32) -> (i32, i32) {
    %c0_i32 = arith.constant 0 : i32
    %c0_i32_0 = arith.constant 0 : i32
    return %arg0, %c0_i32 : i32, i32
  }
}

</mosaic_0001>

<llo_original>
// kernel: tpu_custom_call.1
$region0: #{tpu_custom_call.1}
  #allocation0 [shape = 'u32[]', space=smem, size = 0x4, offset = 0x4, fixed_abs, tag = 'smem constant byte address 0x4 - core index']
  #allocation1 [shape = 'u32[144,128]{1,0:T(1,128)}', space=vmem, size = 0x12000, scoped, tag = 'internal scratch']
  %s0 = inlined_call_operand.vmem [shape: s32[16,1], index: 0, kind: input, shape index: {}]
  %s1 = inlined_call_operand.vmem [shape: f32[100,64], index: 1, kind: input, shape index: {}]
  %s2 = inlined_call_operand.hbm [shape: f32[16,64], index: 2, kind: output, shape index: {}]
  %s3 = sld [smem:[#allocation0]]
  $region18: #{tpu_custom_call.1} parent=0
    _
  %s5 = ssub.s32 1, %s3
  %s6 = scalar_select 0, %s5, %s3
  $region1: #{tpu_custom_call.1} parent=0
    #allocation2 [shape = 'u8[8192]{0}', space=vmem, size = 0x2000, scoped, tag = 'output window, operand 0, single buffered']
    #allocation3 [shape = 's32[1]{0}', space=sflag, size = 0x4, scoped, tag = 'scoped memory for tpu_custom_call.1']
    %7 = vsyncpa [#allocation3], 0
    // Predicated region
    $region2: #{tpu_custom_call.1} parent=1 // pred_check
      _
    $region3: #{tpu_custom_call.1} parent=1 // pred_check_branch
      %9 = sbr.rel (0) target = $region5
    $region4: #{tpu_custom_call.1} parent=1 // pred_region
      _
    $region5: #{tpu_custom_call.1} parent=1 // pred_fallthru
      _
    // Predicated region
    $region6: #{tpu_custom_call.1} parent=1 // pred_check
      _
    $region7: #{tpu_custom_call.1} parent=1 // pred_check_branch
      %11 = sbr.rel (0) target = $region9
    $region8: #{tpu_custom_call.1} parent=1 // pred_region
      _
    $region9: #{tpu_custom_call.1} parent=1 // pred_fallthru
      _
    %v12 = vlaneseq
    %v13 = vand.u32 %v12, 127
    %v14 = vld [vmem:[%s0] sm:$0xff]
    %v15 = vld [vmem:[%s0 + $0x8] sm:$0xff]
    %16 = vset.pattern.permute.xlu0 0
    %17 = vperm.xlu0 %16, %v14
    %v18 = vpop.permute.xlu0 %17
    %19 = vset.pattern.permute.xlu0 0
    %20 = vperm.xlu0 %19, %v15
    %v21 = vpop.permute.xlu0 %20
    %vm22 = vcmp.eq.s32.totalorder %v18, %v13
    %vm23 = vcmp.eq.s32.totalorder %v21, %v13
    %v24 = vsel %vm22, 1, 0
    %v25 = vsel %vm23, 1, 0
    %v26 = vcvt.s32.f32 %v24
    %v27 = vcvt.s32.f32 %v25
    %v28 = vld [vmem:[%s1] sm:$0xff]
    %v29 = vld [vmem:[%s1 + $0x8] sm:$0xff]
    %v30 = vld [vmem:[%s1 + $0x10] sm:$0xff]
    %v31 = vld [vmem:[%s1 + $0x18] sm:$0xff]
    %v32 = vld [vmem:[%s1 + $0x20] sm:$0xff]
    %v33 = vld [vmem:[%s1 + $0x28] sm:$0xff]
    %v34 = vld [vmem:[%s1 + $0x30] sm:$0xff]
    %v35 = vld [vmem:[%s1 + $0x38] sm:$0xff]
    %v36 = vld [vmem:[%s1 + $0x40] sm:$0xff]
    %v37 = vld [vmem:[%s1 + $0x48] sm:$0xff]
    %v38 = vld [vmem:[%s1 + $0x50] sm:$0xff]
    %v39 = vld [vmem:[%s1 + $0x58] sm:$0xff]
    %v40 = vld [vmem:[%s1 + $0x60] sm:$0xf]
    %vm41 = vcmask 818176
    %v43 = vsel %vm41, %v26, 0
    %v46 = vsel %vm41, %v27, 0
    %vm48 = vcmask 1043456
    %v50 = vsel %vm48, %v40, 0
    %52 = vmatprep.subr.mxu0 0.0
    %53 = vmatpush1.msra.mxu0 0.0
    %54 = vmatprep.subr.mxu0 0.0
    %55 = vmatpush1.msra.mxu0 0.0
    %56 = vmatprep.subr.mxu0 0.0
    %57 = vmatpush1.msra.mxu0 0.0
    %58 = vmatprep.subr.mxu0 0.0
    %59 = vmatpush1.msra.mxu0 %v50
    %60 = vmatprep.subr.mxu0 0.0
    %61 = vmatpush1.msra.mxu0 %v39
    %62 = vmatprep.subr.mxu0 0.0
    %63 = vmatpush1.msra.mxu0 %v38
    %64 = vmatprep.subr.mxu0 0.0
    %65 = vmatpush1.msra.mxu0 %v37
    %66 = vmatprep.subr.mxu0 0.0
    %67 = vmatpush1.msra.mxu0 %v36
    %68 = vmatprep.subr.mxu0 0.0
    %69 = vmatpush1.msra.mxu0 %v35
    %70 = vmatprep.subr.mxu0 0.0
    %71 = vmatpush1.msra.mxu0 %v34
    %72 = vmatprep.subr.mxu0 0.0
    %73 = vmatpush1.msra.mxu0 %v33
    %74 = vmatprep.subr.mxu0 0.0
    %75 = vmatpush1.msra.mxu0 %v32
    %76 = vmatprep.subr.mxu0 0.0
    %77 = vmatpush1.msra.mxu0 %v31
    %78 = vmatprep.subr.mxu0 0.0
    %79 = vmatpush1.msra.mxu0 %v30
    %80 = vmatprep.subr.mxu0 0.0
    %81 = vmatpush1.msra.mxu0 %v29
    %82 = vmatprep.subr.mxu0 0.0
    %83 = vmatpush1.msra.mxu0 %v28
    %84 = vmatprep.subr.mxu0 0.0
    %85 = vmatpush2.msra.mxu0 0.0
    %86 = vmatprep.subr.mxu0 0.0
    %87 = vmatpush2.msra.mxu0 0.0
    %88 = vmatprep.subr.mxu0 0.0
    %89 = vmatpush2.msra.mxu0 0.0
    %90 = vmatprep.subr.mxu0 0.0
    %91 = vmatpush2.msra.mxu0 0.0
    %92 = vmatprep.subr.mxu0 0.0
    %93 = vmatpush2.msra.mxu0 0.0
    %94 = vmatprep.subr.mxu0 0.0
    %95 = vmatpush2.msra.mxu0 0.0
    %96 = vmatprep.subr.mxu0 0.0
    %97 = vmatpush2.msra.mxu0 0.0
    %98 = vmatprep.subr.mxu0 0.0
    %99 = vmatpush2.msra.mxu0 0.0
    %100 = vmatprep.subr.mxu0 0.0
    %101 = vmatpush2.msra.mxu0 0.0
    %102 = vmatprep.subr.mxu0 0.0
    %103 = vmatpush2.msra.mxu0 0.0
    %104 = vmatprep.subr.mxu0 0.0
    %105 = vmatpush2.msra.mxu0 0.0
    %106 = vmatprep.subr.mxu0 0.0
    %107 = vmatpush2.msra.mxu0 0.0
    %108 = vmatprep.subr.mxu0 0.0
    %109 = vmatpush2.msra.mxu0 0.0
    %110 = vmatprep.subr.mxu0 0.0
    %111 = vmatpush2.msra.mxu0 0.0
    %112 = vmatprep.subr.mxu0 0.0
    %113 = vmatpush2.msra.mxu0 0.0
    %114 = vmatprep.subr.mxu0 0.0
    %115 = vmatpush2.msra.mxu0 0.0
    %116 = vmatprep.mubr.f32.mxu0 0.0
    %117 = vmatmul.mubr.f32.gmra.mxu0 %v43
    %v118 = vpop.f32.mrf.mxu0
    %v119 = vadd.f32 0.0, %v118
    %v120 = vpop.f32.mrf.mxu0
    %121 = vmatprep.mubr.f32.mxu0 0.0
    %122 = vmatmul.mubr.f32.gmra.mxu0 %v46
    %v123 = vpop.f32.mrf.mxu0
    %v124 = vadd.f32 0.0, %v123
    %v125 = vpop.f32.mrf.mxu0
    %126 = vdwg.mxu0
    %vm127 = vcmask 523264
    %128 = vst.msk [vmem:[#allocation2] sm:$0xff] %vm127, %v119
    %129 = vst.msk [vmem:[#allocation2 + $0x8] sm:$0xff] %vm127, %v124
    // Predicated region
    $region10: #{tpu_custom_call.1} parent=1 // pred_check
      _
    $region11: #{tpu_custom_call.1} parent=1 // pred_check_branch
      %131 = sbr.rel (0) target = $region13
    $region12: #{tpu_custom_call.1} parent=1 // pred_region
      %s133 = ssub.s32 256, 256
      %134 = vsyncadd [#allocation3], %s133
      %s135 = sshll.u32 [#allocation2], 4
      %s136 = int_to_ptr.vmem [resolvable:$true] %s135
      %141 = dma.vmem_to_hbm [thread:$0]  %s136, 256, %s2, [#allocation3], 128, 128, 8
    $region13: #{tpu_custom_call.1} parent=1 // pred_fallthru
      _
    // Predicated region
    $region14: #{tpu_custom_call.1} parent=1 // pred_check
      _
    $region15: #{tpu_custom_call.1} parent=1 // pred_check_branch
      %143 = sbr.rel (0) target = $region17
    $region16: #{tpu_custom_call.1} parent=1 // pred_region
      %144 = dma.done [#allocation3], 256
    $region17: #{tpu_custom_call.1} parent=1 // pred_fallthru
      _
    %145 = vsyncpa [#allocation3], 1

</llo_original>
